<compile_context>
chip_gen: v6e
topology: v6e:2x2x1
jax: 0.10.0
libtpu: 0.0.40
codegen_flags: <defaults>
</compile_context>

<pallas_src>
import functools

import jax
import jax.numpy as jnp
from jax import lax
from jax.experimental import pallas as pl
from jax.experimental.pallas import tpu as pltpu


def _round_up(v, m):
    return (v + m - 1) // m * m


def _conv3_relu(x, w_cat, bias, col, s, seq_len):
    """k=3 'same' Conv1d + bias + ReLU on a dilated lane slab.

    x       : (Cin, W)  activation; valid samples sit at lane columns g = p * s
    w_cat   : (3*Cout, Cin) stacked taps; rows [t*Cout:(t+1)*Cout] hold PyTorch tap t
    bias    : (Cout, 1)
    col     : (1, W) int32 lane-index iota
    s       : static int, lane spacing between consecutive logical samples
    seq_len : static int, original (block-0) sequence length in lanes
    """
    cout = w_cat.shape[0] // 3
    w = x.shape[-1]
    # One MXU matmul performs the channel contraction for all three taps at once.
    u = jnp.dot(w_cat, x, preferred_element_type=jnp.float32)        # (3*Cout, W)
    u_l = u[0 * cout:1 * cout]       # tap 0 -> multiplies x[p-1]
    u_c = u[1 * cout:2 * cout]       # tap 1 -> multiplies x[p]
    u_r = u[2 * cout:3 * cout]       # tap 2 -> multiplies x[p+1]
    # +-1 logical-tap shifts = lane rotations by +-s (XLU), zero-masked at the sequence
    # boundaries (p == 0 / p == L-1) so padding / wrap-around never leaks in.
    left = jnp.where(col != 0,
                     pltpu.roll(u_l, shift=s, axis=1), 0.0)
    right = jnp.where(col != seq_len - s,
                      pltpu.roll(u_r, shift=(w - s) % w, axis=1), 0.0)
    return jnp.maximum(left + u_c + right + bias, 0.0)


def encoder_kernel(x_ref, w_ref, b_ref, out_ref, *, cfg, seq_len, c_max):
    """One batch item: every encoding block (conv-relu-conv-relu-maxpool) fused.

    x_ref   : (1, Cin, W)          lane-padded input (W multiple of 128)
    w_ref   : (W_ROWS, CMAX_IN)    packed stacked-tap conv weights (static row offsets)
    b_ref   : (B_ROWS, 1)          packed conv biases
    out_ref : (1, (nb+1)*c_max, W) packed lane-dense output: skip slabs then final slab
    cfg     : static tuple of (cin, cout, w1_off, w2_off, b1_off, b2_off) per block
    """
    w = x_ref.shape[-1]
    col = lax.broadcasted_iota(jnp.int32, (1, w), 1)
    x = x_ref[0]                                              # (Cin, W)
    num_blocks = len(cfg)
    for bidx, (cin, cout, w1o, w2o, b1o, b2o) in enumerate(cfg):
        s = 1 << bidx                                         # lane spacing of samples
        w1 = w_ref[w1o:w1o + 3 * cout, 0:cin]
        w2 = w_ref[w2o:w2o + 3 * cout, 0:cout]
        b1 = b_ref[b1o:b1o + cout, :]
        b2 = b_ref[b2o:b2o + cout, :]
        h = _conv3_relu(x, w1, b1, col, s, seq_len)
        y = _conv3_relu(h, w2, b2, col, s, seq_len)
        # Pre-pool skip connection: full-width (lane-dense) store.
        out_ref[0, bidx * c_max:bidx * c_max + cout, :] = y
        # MaxPool1d(kernel=2, stride=2), in-lane: pooled samples keep their column,
        # spacing doubles to 2*s.  No compaction, no selector matmul.
        x = jnp.maximum(y, pltpu.roll(y, shift=(w - s) % w, axis=1))
    out_ref[0, num_blocks * c_max:num_blocks * c_max + cfg[-1][1], :] = x


def _stack_taps(wgt):
    """PyTorch Conv1d weight (Cout, Cin, 3) -> (3*Cout, Cin), rows grouped by tap."""
    cout, cin, k = wgt.shape
    return jnp.transpose(wgt, (2, 0, 1)).reshape(k * cout, cin)


@jax.jit
def encoder_forward(x, params):
    """Encoder.forward: returns (skip_connections list, x).  x: (N, Cin, L) f32."""
    n, c_in, seq_len = x.shape
    num_blocks = len(params)
    assert seq_len % (2 ** num_blocks) == 0
    w_lanes = _round_up(seq_len, 128)                 # lane-dense slab width

    # ---- consolidate all conv weights / biases into two packed slabs ----
    couts = [p["w1"].shape[0] for p in params]
    c_max = max(couts)
    cmax_in = max([c_in] + couts)                     # widest contraction dim
    w_parts, b_parts, cfg = [], [], []
    w_off = b_off = 0
    cin = c_in
    for p in params:
        cout = p["w1"].shape[0]
        woffs = []
        for wgt, cin_j in ((p["w1"], cin), (p["w2"], cout)):
            ws = _stack_taps(wgt).astype(jnp.float32)                 # (3*cout, cin_j)
            rows = _round_up(3 * cout, 8)
            w_parts.append(jnp.pad(ws, ((0, rows - 3 * cout), (0, cmax_in - cin_j))))
            woffs.append(w_off)
            w_off += rows
        boffs = []
        for bias in (p["b1"], p["b2"]):
            cb = bias.shape[0]
            rows = _round_up(cb, 8)
            b_parts.append(jnp.pad(bias.astype(jnp.float32),
                                   (0, rows - cb)).reshape(rows, 1))
            boffs.append(b_off)
            b_off += rows
        cfg.append((cin, cout, woffs[0], woffs[1], boffs[0], boffs[1]))
        cin = cout
    wslab = jnp.concatenate(w_parts, axis=0)          # (W_ROWS, cmax_in)
    bslab = jnp.concatenate(b_parts, axis=0)          # (B_ROWS, 1)

    # ---- lane-pad the input; batch stays a (parallel) grid axis ----
    x_pad = jnp.pad(x.astype(jnp.float32), ((0, 0), (0, 0), (0, w_lanes - seq_len)))

    out_rows = (num_blocks + 1) * c_max
    kernel = functools.partial(encoder_kernel, cfg=tuple(cfg),
                               seq_len=seq_len, c_max=c_max)
    out = pl.pallas_call(
        kernel,
        out_shape=jax.ShapeDtypeStruct((n, out_rows, w_lanes), jnp.float32),
        grid=(n,),
        in_specs=[
            pl.BlockSpec((1, c_in, w_lanes), lambda i: (i, 0, 0)),
            pl.BlockSpec(wslab.shape, lambda i: (0, 0)),
            pl.BlockSpec(bslab.shape, lambda i: (0, 0)),
        ],
        out_specs=pl.BlockSpec((1, out_rows, w_lanes), lambda i: (i, 0, 0)),
        compiler_params=pltpu.CompilerParams(dimension_semantics=("parallel",)),
    )(x_pad, wslab, bslab)

    # ---- unpack: skips + final, already in (N, C, L) channel-major order ----
    skips = []
    for b, (_cin_b, cout, *_rest) in enumerate(cfg):
        s = 1 << b
        skips.append(out[:, b * c_max:b * c_max + cout, 0:seq_len:s])
    s_fin = 1 << num_blocks
    final = out[:, num_blocks * c_max:num_blocks * c_max + cfg[-1][1],
                0:seq_len:s_fin]
    return skips, final


def init_encoder_params(key, in_channels, out_channels_first, num_blocks):
    """Deterministic PyTorch-Conv1d-style init (uniform +/- 1/sqrt(fan_in*k))."""
    params = []
    cin = in_channels
    cout = out_channels_first
    for _ in range(num_blocks):
        key, k1, k2, k3, k4 = jax.random.split(key, 5)
        bnd1 = 1.0 / jnp.sqrt(cin * 3.0)
        bnd2 = 1.0 / jnp.sqrt(cout * 3.0)
        params.append(dict(
            w1=jax.random.uniform(k1, (cout, cin, 3), jnp.float32, -bnd1, bnd1),
            b1=jax.random.uniform(k2, (cout,), jnp.float32, -bnd1, bnd1),
            w2=jax.random.uniform(k3, (cout, cout, 3), jnp.float32, -bnd2, bnd2),
            b2=jax.random.uniform(k4, (cout,), jnp.float32, -bnd2, bnd2),
        ))
        cin = cout
        cout = cin * 2
    return params


# ---- pure-JAX reference (for correctness check only) ----
def _ref_block(x, w1, b1, w2, b2):
    dn = ("NCH", "OIH", "NCH")
    h = lax.conv_general_dilated(x, w1, (1,), ((1, 1),), dimension_numbers=dn)
    h = jnp.maximum(h + b1[None, :, None], 0.0)
    y = lax.conv_general_dilated(h, w2, (1,), ((1, 1),), dimension_numbers=dn)
    y = jnp.maximum(y + b2[None, :, None], 0.0)
    n, c, l = y.shape
    return jnp.max(y.reshape(n, c, l // 2, 2), -1), y


def _ref_encoder(x, params):
    skips = []
    for p in params:
        x, skip = _ref_block(x, p["w1"], p["b1"], p["w2"], p["b2"])
        skips.append(skip)
    return skips, x


if __name__ == "__main__":
    key = jax.random.PRNGKey(0)
    kx, kp = jax.random.split(key)

    N, Cin, L = 2, 4, 16
    out_channels_first = 8
    num_encoding_blocks = 2

    x = jax.random.normal(kx, (N, Cin, L), jnp.float32)
    params = init_encoder_params(kp, Cin, out_channels_first, num_encoding_blocks)

    skips, out = encoder_forward(x, params)
    out = jax.block_until_ready(out)
    skips = [jax.block_until_ready(s) for s in skips]

    # expected shapes: skips [(2,8,16), (2,16,8)], out (2,16,4)
    assert skips[0].shape == (N, 8, 16)
    assert skips[1].shape == (N, 16, 8)
    assert out.shape == (N, 16, 4)

    # sanity check against pure-JAX reference
    ref_skips, ref_out = _ref_encoder(x, params)
    assert jnp.allclose(out, ref_out, atol=1e-4), "final output mismatch"
    for s, rs in zip(skips, ref_skips):
        assert jnp.allclose(s, rs, atol=1e-4), "skip connection mismatch"

    print("KERNEL_OK")
</pallas_src>

<mosaic_0001>
module attributes {stable_mosaic.version = 11 : i64} {
  func.func @encoder_kernel(%arg0: i32, %arg1: memref<1x4x128xf32, #tpu.memory_space<vmem>>, %arg2: memref<144x16xf32, #tpu.memory_space<vmem>>, %arg3: memref<48x1xf32, #tpu.memory_space<vmem>>, %arg4: memref<1x48x128xf32, #tpu.memory_space<vmem>>) attributes {dimension_semantics = [#tpu.dimension_semantics<parallel>], iteration_bounds = array<i64: 2>, scalar_prefetch = 0 : i64, scratch_operands = 0 : i64, tpu.core_type = #tpu.core_type<tc>, window_params = [{transform_indices = @transform_0, window_bounds = array<i64: 1, 4, 128>}, {pipeline_mode = #tpu.pipeline_mode<synchronous>, transform_indices = @transform_1, window_bounds = array<i64: 144, 16>}, {pipeline_mode = #tpu.pipeline_mode<synchronous>, transform_indices = @transform_2, window_bounds = array<i64: 48, 1>}, {transform_indices = @transform_3, window_bounds = array<i64: 1, 48, 128>}]} {
    %0 = tpu.iota {dimensions = array<i32: 1>} : vector<1x128xi32>
    %c0 = arith.constant 0 : index
    %c0_0 = arith.constant 0 : index
    %c0_1 = arith.constant 0 : index
    %1 = vector.load %arg1[%c0, %c0_0, %c0_1] : memref<1x4x128xf32, #tpu.memory_space<vmem>>, vector<1x4x128xf32>
    %2 = vector.shape_cast %1 : vector<1x4x128xf32> to vector<4x128xf32>
    %c0_2 = arith.constant 0 : index
    %c0_3 = arith.constant 0 : index
    %3 = vector.load %arg2[%c0_2, %c0_3] : memref<144x16xf32, #tpu.memory_space<vmem>>, vector<24x4xf32>
    %c24 = arith.constant 24 : index
    %c0_4 = arith.constant 0 : index
    %4 = vector.load %arg2[%c24, %c0_4] : memref<144x16xf32, #tpu.memory_space<vmem>>, vector<24x8xf32>
    %c0_5 = arith.constant 0 : index
    %c0_6 = arith.constant 0 : index
    %5 = vector.load %arg3[%c0_5, %c0_6] : memref<48x1xf32, #tpu.memory_space<vmem>>, vector<8x1xf32>
    %c8 = arith.constant 8 : index
    %c0_7 = arith.constant 0 : index
    %6 = vector.load %arg3[%c8, %c0_7] : memref<48x1xf32, #tpu.memory_space<vmem>>, vector<8x1xf32>
    %cst = arith.constant dense<0.000000e+00> : vector<24x128xf32>
    %7 = tpu.matmul %3, %2, %cst {dimension_numbers = #tpu.dot_dimension_numbers<[1], [0], [0], [1], [0, 0, 1, 1], [], []>} : vector<24x4xf32>, vector<4x128xf32>, vector<24x128xf32> -> vector<24x128xf32>
    %8 = vector.extract_strided_slice %7 {offsets = [0, 0], sizes = [8, 128], strides = [1, 1]} : vector<24x128xf32> to vector<8x128xf32>
    %9 = vector.extract_strided_slice %7 {offsets = [8, 0], sizes = [8, 128], strides = [1, 1]} : vector<24x128xf32> to vector<8x128xf32>
    %10 = vector.extract_strided_slice %7 {offsets = [16, 0], sizes = [8, 128], strides = [1, 1]} : vector<24x128xf32> to vector<8x128xf32>
    %c0_i32 = arith.constant 0 : i32
    %11 = vector.broadcast %c0_i32 : i32 to vector<1x128xi32>
    %12 = arith.cmpi ne, %0, %11 : vector<1x128xi32>
    %c1_i32 = arith.constant 1 : i32
    %13 = tpu.dynamic_rotate %8 by %c1_i32 dim 1 : vector<8x128xf32>, i32 -> vector<8x128xf32>
    %cst_8 = arith.constant 0.000000e+00 : f32
    %14 = vector.shape_cast %12 : vector<1x128xi1> to vector<1x128xi1>
    %15 = vector.broadcast %14 : vector<1x128xi1> to vector<8x128xi1>
    %16 = vector.broadcast %cst_8 : f32 to vector<8x128xf32>
    %17 = arith.select %15, %13, %16 : vector<8x128xi1>, vector<8x128xf32>
    %c15_i32 = arith.constant 15 : i32
    %18 = vector.broadcast %c15_i32 : i32 to vector<1x128xi32>
    %19 = arith.cmpi ne, %0, %18 : vector<1x128xi32>
    %c127_i32 = arith.constant 127 : i32
    %20 = tpu.dynamic_rotate %10 by %c127_i32 dim 1 : vector<8x128xf32>, i32 -> vector<8x128xf32>
    %cst_9 = arith.constant 0.000000e+00 : f32
    %21 = vector.shape_cast %19 : vector<1x128xi1> to vector<1x128xi1>
    %22 = vector.broadcast %21 : vector<1x128xi1> to vector<8x128xi1>
    %23 = vector.broadcast %cst_9 : f32 to vector<8x128xf32>
    %24 = arith.select %22, %20, %23 : vector<8x128xi1>, vector<8x128xf32>
    %25 = arith.addf %17, %9 : vector<8x128xf32>
    %26 = arith.addf %25, %24 : vector<8x128xf32>
    %27 = vector.broadcast %5 : vector<8x1xf32> to vector<8x128xf32>
    %28 = arith.addf %26, %27 : vector<8x128xf32>
    %cst_10 = arith.constant 0.000000e+00 : f32
    %29 = vector.broadcast %cst_10 : f32 to vector<8x128xf32>
    %30 = arith.maximumf %28, %29 : vector<8x128xf32>
    %cst_11 = arith.constant dense<0.000000e+00> : vector<24x128xf32>
    %31 = tpu.matmul %4, %30, %cst_11 {dimension_numbers = #tpu.dot_dimension_numbers<[1], [0], [0], [1], [0, 0, 1, 1], [], []>} : vector<24x8xf32>, vector<8x128xf32>, vector<24x128xf32> -> vector<24x128xf32>
    %32 = vector.extract_strided_slice %31 {offsets = [0, 0], sizes = [8, 128], strides = [1, 1]} : vector<24x128xf32> to vector<8x128xf32>
    %33 = vector.extract_strided_slice %31 {offsets = [8, 0], sizes = [8, 128], strides = [1, 1]} : vector<24x128xf32> to vector<8x128xf32>
    %34 = vector.extract_strided_slice %31 {offsets = [16, 0], sizes = [8, 128], strides = [1, 1]} : vector<24x128xf32> to vector<8x128xf32>
    %c0_i32_12 = arith.constant 0 : i32
    %35 = vector.broadcast %c0_i32_12 : i32 to vector<1x128xi32>
    %36 = arith.cmpi ne, %0, %35 : vector<1x128xi32>
    %c1_i32_13 = arith.constant 1 : i32
    %37 = tpu.dynamic_rotate %32 by %c1_i32_13 dim 1 : vector<8x128xf32>, i32 -> vector<8x128xf32>
    %cst_14 = arith.constant 0.000000e+00 : f32
    %38 = vector.shape_cast %36 : vector<1x128xi1> to vector<1x128xi1>
    %39 = vector.broadcast %38 : vector<1x128xi1> to vector<8x128xi1>
    %40 = vector.broadcast %cst_14 : f32 to vector<8x128xf32>
    %41 = arith.select %39, %37, %40 : vector<8x128xi1>, vector<8x128xf32>
    %c15_i32_15 = arith.constant 15 : i32
    %42 = vector.broadcast %c15_i32_15 : i32 to vector<1x128xi32>
    %43 = arith.cmpi ne, %0, %42 : vector<1x128xi32>
    %c127_i32_16 = arith.constant 127 : i32
    %44 = tpu.dynamic_rotate %34 by %c127_i32_16 dim 1 : vector<8x128xf32>, i32 -> vector<8x128xf32>
    %cst_17 = arith.constant 0.000000e+00 : f32
    %45 = vector.shape_cast %43 : vector<1x128xi1> to vector<1x128xi1>
    %46 = vector.broadcast %45 : vector<1x128xi1> to vector<8x128xi1>
    %47 = vector.broadcast %cst_17 : f32 to vector<8x128xf32>
    %48 = arith.select %46, %44, %47 : vector<8x128xi1>, vector<8x128xf32>
    %49 = arith.addf %41, %33 : vector<8x128xf32>
    %50 = arith.addf %49, %48 : vector<8x128xf32>
    %51 = vector.broadcast %6 : vector<8x1xf32> to vector<8x128xf32>
    %52 = arith.addf %50, %51 : vector<8x128xf32>
    %cst_18 = arith.constant 0.000000e+00 : f32
    %53 = vector.broadcast %cst_18 : f32 to vector<8x128xf32>
    %54 = arith.maximumf %52, %53 : vector<8x128xf32>
    %c0_19 = arith.constant 0 : index
    %c0_20 = arith.constant 0 : index
    %c0_21 = arith.constant 0 : index
    %55 = vector.load %arg4[%c0_19, %c0_20, %c0_21] : memref<1x48x128xf32, #tpu.memory_space<vmem>>, vector<1x8x128xf32>
    %56 = vector.shape_cast %55 : vector<1x8x128xf32> to vector<8x128xf32>
    %57 = vector.shape_cast %54 : vector<8x128xf32> to vector<1x8x128xf32>
    tpu.vector_store %arg4[%c0_19, %c0_20, %c0_21], %57 {strides = array<i32>} : memref<1x48x128xf32, #tpu.memory_space<vmem>>, vector<1x8x128xf32>,
    %c127_i32_22 = arith.constant 127 : i32
    %58 = tpu.dynamic_rotate %54 by %c127_i32_22 dim 1 : vector<8x128xf32>, i32 -> vector<8x128xf32>
    %59 = arith.maximumf %54, %58 : vector<8x128xf32>
    %c48 = arith.constant 48 : index
    %c0_23 = arith.constant 0 : index
    %60 = vector.load %arg2[%c48, %c0_23] : memref<144x16xf32, #tpu.memory_space<vmem>>, vector<48x8xf32>
    %c96 = arith.constant 96 : index
    %c0_24 = arith.constant 0 : index
    %61 = vector.load %arg2[%c96, %c0_24] : memref<144x16xf32, #tpu.memory_space<vmem>>, vector<48x16xf32>
    %c16 = arith.constant 16 : index
    %c0_25 = arith.constant 0 : index
    %62 = vector.load %arg3[%c16, %c0_25] : memref<48x1xf32, #tpu.memory_space<vmem>>, vector<16x1xf32>
    %c32 = arith.constant 32 : index
    %c0_26 = arith.constant 0 : index
    %63 = vector.load %arg3[%c32, %c0_26] : memref<48x1xf32, #tpu.memory_space<vmem>>, vector<16x1xf32>
    %cst_27 = arith.constant dense<0.000000e+00> : vector<48x128xf32>
    %64 = tpu.matmul %60, %59, %cst_27 {dimension_numbers = #tpu.dot_dimension_numbers<[1], [0], [0], [1], [0, 0, 1, 1], [], []>} : vector<48x8xf32>, vector<8x128xf32>, vector<48x128xf32> -> vector<48x128xf32>
    %65 = vector.extract_strided_slice %64 {offsets = [0, 0], sizes = [16, 128], strides = [1, 1]} : vector<48x128xf32> to vector<16x128xf32>
    %66 = vector.extract_strided_slice %64 {offsets = [16, 0], sizes = [16, 128], strides = [1, 1]} : vector<48x128xf32> to vector<16x128xf32>
    %67 = vector.extract_strided_slice %64 {offsets = [32, 0], sizes = [16, 128], strides = [1, 1]} : vector<48x128xf32> to vector<16x128xf32>
    %c0_i32_28 = arith.constant 0 : i32
    %68 = vector.broadcast %c0_i32_28 : i32 to vector<1x128xi32>
    %69 = arith.cmpi ne, %0, %68 : vector<1x128xi32>
    %c2_i32 = arith.constant 2 : i32
    %70 = tpu.dynamic_rotate %65 by %c2_i32 dim 1 : vector<16x128xf32>, i32 -> vector<16x128xf32>
    %cst_29 = arith.constant 0.000000e+00 : f32
    %71 = vector.shape_cast %69 : vector<1x128xi1> to vector<1x128xi1>
    %72 = vector.broadcast %71 : vector<1x128xi1> to vector<16x128xi1>
    %73 = vector.broadcast %cst_29 : f32 to vector<16x128xf32>
    %74 = arith.select %72, %70, %73 : vector<16x128xi1>, vector<16x128xf32>
    %c14_i32 = arith.constant 14 : i32
    %75 = vector.broadcast %c14_i32 : i32 to vector<1x128xi32>
    %76 = arith.cmpi ne, %0, %75 : vector<1x128xi32>
    %c126_i32 = arith.constant 126 : i32
    %77 = tpu.dynamic_rotate %67 by %c126_i32 dim 1 : vector<16x128xf32>, i32 -> vector<16x128xf32>
    %cst_30 = arith.constant 0.000000e+00 : f32
    %78 = vector.shape_cast %76 : vector<1x128xi1> to vector<1x128xi1>
    %79 = vector.broadcast %78 : vector<1x128xi1> to vector<16x128xi1>
    %80 = vector.broadcast %cst_30 : f32 to vector<16x128xf32>
    %81 = arith.select %79, %77, %80 : vector<16x128xi1>, vector<16x128xf32>
    %82 = arith.addf %74, %66 : vector<16x128xf32>
    %83 = arith.addf %82, %81 : vector<16x128xf32>
    %84 = vector.broadcast %62 : vector<16x1xf32> to vector<16x128xf32>
    %85 = arith.addf %83, %84 : vector<16x128xf32>
    %cst_31 = arith.constant 0.000000e+00 : f32
    %86 = vector.broadcast %cst_31 : f32 to vector<16x128xf32>
    %87 = arith.maximumf %85, %86 : vector<16x128xf32>
    %cst_32 = arith.constant dense<0.000000e+00> : vector<48x128xf32>
    %88 = tpu.matmul %61, %87, %cst_32 {dimension_numbers = #tpu.dot_dimension_numbers<[1], [0], [0], [1], [0, 0, 1, 1], [], []>} : vector<48x16xf32>, vector<16x128xf32>, vector<48x128xf32> -> vector<48x128xf32>
    %89 = vector.extract_strided_slice %88 {offsets = [0, 0], sizes = [16, 128], strides = [1, 1]} : vector<48x128xf32> to vector<16x128xf32>
    %90 = vector.extract_strided_slice %88 {offsets = [16, 0], sizes = [16, 128], strides = [1, 1]} : vector<48x128xf32> to vector<16x128xf32>
    %91 = vector.extract_strided_slice %88 {offsets = [32, 0], sizes = [16, 128], strides = [1, 1]} : vector<48x128xf32> to vector<16x128xf32>
    %c0_i32_33 = arith.constant 0 : i32
    %92 = vector.broadcast %c0_i32_33 : i32 to vector<1x128xi32>
    %93 = arith.cmpi ne, %0, %92 : vector<1x128xi32>
    %c2_i32_34 = arith.constant 2 : i32
    %94 = tpu.dynamic_rotate %89 by %c2_i32_34 dim 1 : vector<16x128xf32>, i32 -> vector<16x128xf32>
    %cst_35 = arith.constant 0.000000e+00 : f32
    %95 = vector.shape_cast %93 : vector<1x128xi1> to vector<1x128xi1>
    %96 = vector.broadcast %95 : vector<1x128xi1> to vector<16x128xi1>
    %97 = vector.broadcast %cst_35 : f32 to vector<16x128xf32>
    %98 = arith.select %96, %94, %97 : vector<16x128xi1>, vector<16x128xf32>
    %c14_i32_36 = arith.constant 14 : i32
    %99 = vector.broadcast %c14_i32_36 : i32 to vector<1x128xi32>
    %100 = arith.cmpi ne, %0, %99 : vector<1x128xi32>
    %c126_i32_37 = arith.constant 126 : i32
    %101 = tpu.dynamic_rotate %91 by %c126_i32_37 dim 1 : vector<16x128xf32>, i32 -> vector<16x128xf32>
    %cst_38 = arith.constant 0.000000e+00 : f32
    %102 = vector.shape_cast %100 : vector<1x128xi1> to vector<1x128xi1>
    %103 = vector.broadcast %102 : vector<1x128xi1> to vector<16x128xi1>
    %104 = vector.broadcast %cst_38 : f32 to vector<16x128xf32>
    %105 = arith.select %103, %101, %104 : vector<16x128xi1>, vector<16x128xf32>
    %106 = arith.addf %98, %90 : vector<16x128xf32>
    %107 = arith.addf %106, %105 : vector<16x128xf32>
    %108 = vector.broadcast %63 : vector<16x1xf32> to vector<16x128xf32>
    %109 = arith.addf %107, %108 : vector<16x128xf32>
    %cst_39 = arith.constant 0.000000e+00 : f32
    %110 = vector.broadcast %cst_39 : f32 to vector<16x128xf32>
    %111 = arith.maximumf %109, %110 : vector<16x128xf32>
    %c0_40 = arith.constant 0 : index
    %c16_41 = arith.constant 16 : index
    %c0_42 = arith.constant 0 : index
    %112 = vector.load %arg4[%c0_40, %c16_41, %c0_42] : memref<1x48x128xf32, #tpu.memory_space<vmem>>, vector<1x16x128xf32>
    %113 = vector.shape_cast %112 : vector<1x16x128xf32> to vector<16x128xf32>
    %114 = vector.shape_cast %111 : vector<16x128xf32> to vector<1x16x128xf32>
    tpu.vector_store %arg4[%c0_40, %c16_41, %c0_42], %114 {strides = array<i32>} : memref<1x48x128xf32, #tpu.memory_space<vmem>>, vector<1x16x128xf32>,
    %c126_i32_43 = arith.constant 126 : i32
    %115 = tpu.dynamic_rotate %111 by %c126_i32_43 dim 1 : vector<16x128xf32>, i32 -> vector<16x128xf32>
    %116 = arith.maximumf %111, %115 : vector<16x128xf32>
    %c0_44 = arith.constant 0 : index
    %c32_45 = arith.constant 32 : index
    %c0_46 = arith.constant 0 : index
    %117 = vector.load %arg4[%c0_44, %c32_45, %c0_46] : memref<1x48x128xf32, #tpu.memory_space<vmem>>, vector<1x16x128xf32>
    %118 = vector.shape_cast %117 : vector<1x16x128xf32> to vector<16x128xf32>
    %119 = vector.shape_cast %116 : vector<16x128xf32> to vector<1x16x128xf32>
    tpu.vector_store %arg4[%c0_44, %c32_45, %c0_46], %119 {strides = array<i32>} : memref<1x48x128xf32, #tpu.memory_space<vmem>>, vector<1x16x128xf32>,
    return
  }
  func.func @transform_0(%arg0: i32) -> (i32, i32, i32) {
    %c0_i32 = arith.constant 0 : i32
    %c0_i32_0 = arith.constant 0 : i32
    %c0_i32_1 = arith.constant 0 : i32
    return %arg0, %c0_i32, %c0_i32_0 : i32, i32, i32
  }
  func.func @transform_1(%arg0: i32) -> (i32, i32) {
    %c0_i32 = arith.constant 0 : i32
    %c0_i32_0 = arith.constant 0 : i32
    %c0_i32_1 = arith.constant 0 : i32
    return %c0_i32, %c0_i32_0 : i32, i32
  }
  func.func @transform_2(%arg0: i32) -> (i32, i32) {
    %c0_i32 = arith.constant 0 : i32
    %c0_i32_0 = arith.constant 0 : i32
    %c0_i32_1 = arith.constant 0 : i32
    return %c0_i32, %c0_i32_0 : i32, i32
  }
  func.func @transform_3(%arg0: i32) -> (i32, i32, i32) {
    %c0_i32 = arith.constant 0 : i32
    %c0_i32_0 = arith.constant 0 : i32
    %c0_i32_1 = arith.constant 0 : i32
    return %arg0, %c0_i32, %c0_i32_0 : i32, i32, i32
  }
}

</mosaic_0001>

<llo_original>
// kernel: encoder_forward.1
$region0: #{encoder_forward.1}
  #allocation0 [shape = 'u32[]', space=smem, size = 0x4, offset = 0x4, fixed_abs, tag = 'smem constant byte address 0x4 - core index']
  #allocation1 [shape = 'u32[144,128]{1,0:T(1,128)}', space=vmem, size = 0x12000, scoped, tag = 'internal scratch']
  %s0 = inlined_call_operand.vmem [shape: f32[2,4,128], index: 0, kind: input, shape index: {}]
  %s1 = inlined_call_operand.vmem [shape: f32[144,16], index: 1, kind: input, shape index: {}]
  %s2 = inlined_call_operand.vmem [shape: f32[48,1], index: 2, kind: input, shape index: {}]
  %s3 = inlined_call_operand.vmem [shape: f32[2,48,128], index: 3, kind: output, shape index: {}]
  %s4 = sld [smem:[#allocation0]]
  $region45: #{encoder_forward.1} parent=0
    _
  %s6 = ssub.s32 1, %s4
  %s7 = scalar_select 0, %s6, %s4
  loop: start=0, step=1, limit=4
  $region2: #{encoder_forward.1} parent=0 // loop_pre_header
    _
  $region3: #{encoder_forward.1} parent=0 // loop_header
    %s9 = sphi 0, %s13
    %p10 = scmp.ge.s32.totalorder %s9, 4
    %s19 = sphi 0, %s21
    %s22 = sphi 0, %s19
    %s23 = sphi 0, %s22
    %s39 = sphi 0, %s23
    %s43 = sphi 0, %s43
    %s45 = sphi 0, %s43
    %s46 = sphi 0, %s45
    %s60 = sphi 0, %s46
    %s64 = sphi 0, %s64
    %s66 = sphi 0, %s64
    %s67 = sphi 0, %s66
    %s81 = sphi 0, %s67
    %s87 = sphi 0, %s89
    %s90 = sphi 0, %s87
    %s91 = sphi 0, %s90
    %s107 = sphi 0, %s91
  $region4: #{encoder_forward.1} parent=0 // loop_header_branch
    %12 = sbr.rel (%p10) target = $region8
  $region5: #{encoder_forward.1} parent=0 // loop_body
    %s14 = ssub.s32 %s9, 1
    %s15 = ssub.s32 %s9, 2
    %s16 = sadd.s32 %s9, 1
    %s17 = ssub.s32 %s9, %s16
    %p18 = scmp.eq.s32.totalorder %s17, 0
    %s20 = sadd.s32 %s19, 1
    %s21 = scalar_select %p18, %s19, %s20
    %p24 = pneg %p18
    %p25 = scmp.eq.s32.totalorder %s9, 1
    %p26 = por %p24, %p25
    %p27 = scmp.ne.s32.totalorder %s19, %s22
    %p28 = scmp.eq.s32.totalorder %s9, 0
    %p29 = por %p27, %p28
    %p30 = scmp.ne.s32.totalorder %s19, %s22
    %p31 = scmp.eq.s32.totalorder %s14, 1
    %p32 = por %p30, %p31
    %p33 = scmp.ne.s32.totalorder %s22, %s23
    %p34 = scmp.eq.s32.totalorder %s14, 0
    %p35 = por %p33, %p34
    %p36 = scmp.ne.s32.totalorder %s22, %s23
    %p37 = scmp.eq.s32.totalorder %s15, 1
    %p38 = por %p36, %p37
    %p40 = scmp.ne.s32.totalorder %s23, %s39
    %p41 = scmp.eq.s32.totalorder %s15, 0
    %p42 = por %p40, %p41
    %s44 = sadd.s32 %s43, 1
    %p47 = scmp.eq.s32.totalorder %s9, 1
    %p48 = scmp.ne.s32.totalorder %s43, %s45
    %p49 = scmp.eq.s32.totalorder %s9, 0
    %p50 = por %p48, %p49
    %p51 = scmp.ne.s32.totalorder %s43, %s45
    %p52 = scmp.eq.s32.totalorder %s14, 1
    %p53 = por %p51, %p52
    %p54 = scmp.ne.s32.totalorder %s45, %s46
    %p55 = scmp.eq.s32.totalorder %s14, 0
    %p56 = por %p54, %p55
    %p57 = scmp.ne.s32.totalorder %s45, %s46
    %p58 = scmp.eq.s32.totalorder %s15, 1
    %p59 = por %p57, %p58
    %p61 = scmp.ne.s32.totalorder %s46, %s60
    %p62 = scmp.eq.s32.totalorder %s15, 0
    %p63 = por %p61, %p62
    %s65 = sadd.s32 %s64, 1
    %p68 = scmp.eq.s32.totalorder %s9, 1
    %p69 = scmp.ne.s32.totalorder %s64, %s66
    %p70 = scmp.eq.s32.totalorder %s9, 0
    %p71 = por %p69, %p70
    %p72 = scmp.ne.s32.totalorder %s64, %s66
    %p73 = scmp.eq.s32.totalorder %s14, 1
    %p74 = por %p72, %p73
    %p75 = scmp.ne.s32.totalorder %s66, %s67
    %p76 = scmp.eq.s32.totalorder %s14, 0
    %p77 = por %p75, %p76
    %p78 = scmp.ne.s32.totalorder %s66, %s67
    %p79 = scmp.eq.s32.totalorder %s15, 1
    %p80 = por %p78, %p79
    %p82 = scmp.ne.s32.totalorder %s67, %s81
    %p83 = scmp.eq.s32.totalorder %s15, 0
    %p84 = por %p82, %p83
    %s85 = ssub.s32 %s9, %s16
    %p86 = scmp.eq.s32.totalorder %s85, 0
    %s88 = sadd.s32 %s87, 1
    %s89 = scalar_select %p86, %s87, %s88
    %p92 = pneg %p86
    %p93 = scmp.eq.s32.totalorder %s9, 1
    %p94 = por %p92, %p93
    %p95 = scmp.ne.s32.totalorder %s87, %s90
    %p96 = scmp.eq.s32.totalorder %s9, 0
    %p97 = por %p95, %p96
    %p98 = scmp.ne.s32.totalorder %s87, %s90
    %p99 = scmp.eq.s32.totalorder %s14, 1
    %p100 = por %p98, %p99
    %p101 = scmp.ne.s32.totalorder %s90, %s91
    %p102 = scmp.eq.s32.totalorder %s14, 0
    %p103 = por %p101, %p102
    %p104 = scmp.ne.s32.totalorder %s90, %s91
    %p105 = scmp.eq.s32.totalorder %s15, 1
    %p106 = por %p104, %p105
    %p108 = scmp.ne.s32.totalorder %s91, %s107
    %p109 = scmp.eq.s32.totalorder %s15, 0
    %p110 = por %p108, %p109
    %p111 = scmp.le.s32.totalorder 1, %s9
    %p112 = scmp.lt.s32.totalorder %s9, 3
    %p113 = pnand %p111, %p112
    %p114 = pneg %p113
    // Predicated region
    $region9: #{encoder_forward.1} parent=5 // pred_check
      _
    $region10: #{encoder_forward.1} parent=5 // pred_check_branch
      %116 = sbr.rel (%p113) target = $region12
    $region11: #{encoder_forward.1} parent=5 // pred_region
      %s117 = ssub.s32 %s9, 1
      // Predicated region
      $region13: #{encoder_forward.1} parent=11 // pred_check
        %p118 = pneg %p56
      $region14: #{encoder_forward.1} parent=11 // pred_check_branch
        %120 = sbr.rel (%p118) target = $region16
      $region15: #{encoder_forward.1} parent=11 // pred_region
        _
      $region16: #{encoder_forward.1} parent=11 // pred_fallthru
        _
      // Predicated region
      $region17: #{encoder_forward.1} parent=11 // pred_check
        %p121 = pneg %p77
      $region18: #{encoder_forward.1} parent=11 // pred_check_branch
        %123 = sbr.rel (%p121) target = $region20
      $region19: #{encoder_forward.1} parent=11 // pred_region
        _
      $region20: #{encoder_forward.1} parent=11 // pred_fallthru
        _
    $region12: #{encoder_forward.1} parent=5 // pred_fallthru
      _
    %p124 = scmp.lt.s32.totalorder %s9, 2
    // Predicated region
    $region21: #{encoder_forward.1} parent=5 // pred_check
      %p125 = pneg %p124
    $region22: #{encoder_forward.1} parent=5 // pred_check_branch
      %127 = sbr.rel (%p125) target = $region24
    $region23: #{encoder_forward.1} parent=5 // pred_region
      // Predicated region
      $region25: #{encoder_forward.1} parent=23 // pred_check
        %p128 = pneg %p29
      $region26: #{encoder_forward.1} parent=23 // pred_check_branch
        %130 = sbr.rel (%p128) target = $region28
      $region27: #{encoder_forward.1} parent=23 // pred_region
        %p131 = scmp.lt.s32.totalorder %s9, 1
        %s132 = scalar_select %p131, %s9, 1
        %s133 = smul.addr %s132, 4
        %s134 = scalar_lea.vmem %s0, %s133
      $region28: #{encoder_forward.1} parent=23 // pred_fallthru
        _
    $region24: #{encoder_forward.1} parent=5 // pred_fallthru
      _
    %p135 = scmp.le.s32.totalorder 1, %s9
    %p136 = scmp.lt.s32.totalorder %s9, 3
    %p137 = pnand %p135, %p136
    %p138 = pneg %p137
    // Predicated region
    $region29: #{encoder_forward.1} parent=5 // pred_check
      _
    $region30: #{encoder_forward.1} parent=5 // pred_check_branch
      %140 = sbr.rel (%p137) target = $region32
    $region31: #{encoder_forward.1} parent=5 // pred_region
      %s141 = ssub.s32 %s9, 1
      %p142 = scmp.lt.s32.totalorder %s14, 1
      %s143 = scalar_select %p142, %s14, 1
      %s144 = smul.addr %s143, 4
      %s145 = scalar_lea.vmem %s0, %s144
      %p146 = pneg %p35
      %p147 = pneg %p32
      %p148 = pneg %p56
      %p149 = pneg %p53
      %p150 = pneg %p77
      %p151 = pneg %p74
      %p152 = pneg %p103
      %p153 = pneg %p100
      %p154 = scmp.lt.s32.totalorder %s14, 1
      %s155 = scalar_select %p154, %s14, 1
      %s156 = smul.addr %s155, 6
      %s157 = smul.addr %s156, 8
      %s158 = scalar_lea.vmem %s3, %s157
      %p159 = scmp.lt.s32.totalorder %s14, 1
      %s160 = scalar_select %p159, %s14, 1
      %s161 = smul.addr %s160, 4
      %s162 = scalar_lea.vmem %s0, %s161
      %p163 = scmp.lt.s32.totalorder %s14, 1
      %s164 = scalar_select %p163, %s14, 1
      %s165 = smul.addr %s164, 6
      %s166 = smul.addr %s165, 8
      %s167 = scalar_lea.vmem %s3, %s166
      %v168 = vlaneseq
      %v169 = vand.u32 %v168, 127
      %v170 = vld [vmem:[%s162] sm:$0xf]
      %v171 = vld [vmem:[%s1] sm:$0xff]
      %v172 = vld [vmem:[%s1 + $0x8] sm:$0xff]
      %v173 = vld [vmem:[%s1 + $0x10] sm:$0xff]
      %v174 = vld [vmem:[%s1 + $0x18] sm:$0xff]
      %v175 = vld [vmem:[%s1 + $0x20] sm:$0xff]
      %v176 = vld [vmem:[%s1 + $0x28] sm:$0xff]
      %v177 = vld [vmem:[%s2] sm:$0xff]
      %v178 = vld [vmem:[%s2 + $0x8] sm:$0xff]
      %vm179 = vcmask 31744
      %v181 = vsel %vm179, %v171, 0
      %v184 = vsel %vm179, %v172, 0
      %v187 = vsel %vm179, %v173, 0
      %vm189 = vcmask 1043456
      %v191 = vsel %vm189, %v170, 0
      %193 = vmatprep.subr.mxu0 0.0
      %194 = vmatpush1.msra.mxu0 0.0
      %195 = vmatprep.subr.mxu0 0.0
      %196 = vmatpush1.msra.mxu0 0.0
      %197 = vmatprep.subr.mxu0 0.0
      %198 = vmatpush1.msra.mxu0 0.0
      %199 = vmatprep.subr.mxu0 0.0
      %200 = vmatpush1.msra.mxu0 0.0
      %201 = vmatprep.subr.mxu0 0.0
      %202 = vmatpush1.msra.mxu0 0.0
      %203 = vmatprep.subr.mxu0 0.0
      %204 = vmatpush1.msra.mxu0 0.0
      %205 = vmatprep.subr.mxu0 0.0
      %206 = vmatpush1.msra.mxu0 0.0
      %207 = vmatprep.subr.mxu0 0.0
      %208 = vmatpush1.msra.mxu0 0.0
      %209 = vmatprep.subr.mxu0 0.0
      %210 = vmatpush1.msra.mxu0 0.0
      %211 = vmatprep.subr.mxu0 0.0
      %212 = vmatpush1.msra.mxu0 0.0
      %213 = vmatprep.subr.mxu0 0.0
      %214 = vmatpush1.msra.mxu0 0.0
      %215 = vmatprep.subr.mxu0 0.0
      %216 = vmatpush1.msra.mxu0 0.0
      %217 = vmatprep.subr.mxu0 0.0
      %218 = vmatpush1.msra.mxu0 0.0
      %219 = vmatprep.subr.mxu0 0.0
      %220 = vmatpush1.msra.mxu0 0.0
      %221 = vmatprep.subr.mxu0 0.0
      %222 = vmatpush1.msra.mxu0 0.0
      %223 = vmatprep.subr.mxu0 0.0
      %224 = vmatpush1.msra.mxu0 %v191
      %225 = vmatprep.subr.mxu0 0.0
      %226 = vmatpush2.msra.mxu0 0.0
      %227 = vmatprep.subr.mxu0 0.0
      %228 = vmatpush2.msra.mxu0 0.0
      %229 = vmatprep.subr.mxu0 0.0
      %230 = vmatpush2.msra.mxu0 0.0
      %231 = vmatprep.subr.mxu0 0.0
      %232 = vmatpush2.msra.mxu0 0.0
      %233 = vmatprep.subr.mxu0 0.0
      %234 = vmatpush2.msra.mxu0 0.0
      %235 = vmatprep.subr.mxu0 0.0
      %236 = vmatpush2.msra.mxu0 0.0
      %237 = vmatprep.subr.mxu0 0.0
      %238 = vmatpush2.msra.mxu0 0.0
      %239 = vmatprep.subr.mxu0 0.0
      %240 = vmatpush2.msra.mxu0 0.0
      %241 = vmatprep.subr.mxu0 0.0
      %242 = vmatpush2.msra.mxu0 0.0
      %243 = vmatprep.subr.mxu0 0.0
      %244 = vmatpush2.msra.mxu0 0.0
      %245 = vmatprep.subr.mxu0 0.0
      %246 = vmatpush2.msra.mxu0 0.0
      %247 = vmatprep.subr.mxu0 0.0
      %248 = vmatpush2.msra.mxu0 0.0
      %249 = vmatprep.subr.mxu0 0.0
      %250 = vmatpush2.msra.mxu0 0.0
      %251 = vmatprep.subr.mxu0 0.0
      %252 = vmatpush2.msra.mxu0 0.0
      %253 = vmatprep.subr.mxu0 0.0
      %254 = vmatpush2.msra.mxu0 0.0
      %255 = vmatprep.subr.mxu0 0.0
      %256 = vmatpush2.msra.mxu0 0.0
      %257 = vmatprep.mubr.f32.mxu0 0.0
      %258 = vmatmul.mubr.f32.gmra.mxu0 %v181
      %v259 = vpop.f32.mrf.mxu0
      %v260 = vadd.f32 0.0, %v259
      %v261 = vpop.f32.mrf.mxu0
      %262 = vmatprep.mubr.f32.mxu0 0.0
      %263 = vmatmul.mubr.f32.gmra.mxu0 %v184
      %v264 = vpop.f32.mrf.mxu0
      %v265 = vadd.f32 0.0, %v264
      %v266 = vpop.f32.mrf.mxu0
      %267 = vmatprep.mubr.f32.mxu0 0.0
      %268 = vmatmul.mubr.f32.gmra.mxu0 %v187
      %v269 = vpop.f32.mrf.mxu0
      %v270 = vadd.f32 0.0, %v269
      %v271 = vpop.f32.mrf.mxu0
      %272 = vdwg.mxu0
      %vm273 = vcmp.ne.s32.totalorder %v169, 0
      %274 = vrot.lane.b32.xlu0 %v260, 1
      %v275 = vpop.permute.xlu0 %274
      %v276 = vsel %vm273, 1, 0
      %vm277 = vcmp.eq.s32.totalorder %v276, 1
      %v278 = vsel %vm277, %v275, 0.0
      %vm279 = vcmp.ne.s32.totalorder %v169, 15
      %280 = vrot.lane.b32.xlu0 %v270, 127
      %v281 = vpop.permute.xlu0 %280
      %v282 = vsel %vm279, 1, 0
      %vm283 = vcmp.eq.s32.totalorder %v282, 1
      %v284 = vsel %vm283, %v281, 0.0
      %v285 = vadd.f32 %v278, %v265
      %v286 = vadd.f32 %v285, %v284
      %288 = vset.pattern.permute.xlu0 0
      %289 = vperm.xlu0 %288, %v177
      %v290 = vpop.permute.xlu0 %289
      %v292 = vadd.f32 %v286, %v290
      %v293 = vmax.f32 %v292, 0.0
      %vm294 = vcmask 64512
      %v296 = vsel %vm294, %v174, 0
      %v299 = vsel %vm294, %v175, 0
      %v302 = vsel %vm294, %v176, 0
      %304 = vmatprep.subr.mxu0 0.0
      %305 = vmatpush1.msra.mxu0 0.0
      %306 = vmatprep.subr.mxu0 0.0
      %307 = vmatpush1.msra.mxu0 0.0
      %308 = vmatprep.subr.mxu0 0.0
      %309 = vmatpush1.msra.mxu0 0.0
      %310 = vmatprep.subr.mxu0 0.0
      %311 = vmatpush1.msra.mxu0 0.0
      %312 = vmatprep.subr.mxu0 0.0
      %313 = vmatpush1.msra.mxu0 0.0
      %314 = vmatprep.subr.mxu0 0.0
      %315 = vmatpush1.msra.mxu0 0.0
      %316 = vmatprep.subr.mxu0 0.0
      %317 = vmatpush1.msra.mxu0 0.0
      %318 = vmatprep.subr.mxu0 0.0
      %319 = vmatpush1.msra.mxu0 0.0
      %320 = vmatprep.subr.mxu0 0.0
      %321 = vmatpush1.msra.mxu0 0.0
      %322 = vmatprep.subr.mxu0 0.0
      %323 = vmatpush1.msra.mxu0 0.0
      %324 = vmatprep.subr.mxu0 0.0
      %325 = vmatpush1.msra.mxu0 0.0
      %326 = vmatprep.subr.mxu0 0.0
      %327 = vmatpush1.msra.mxu0 0.0
      %328 = vmatprep.subr.mxu0 0.0
      %329 = vmatpush1.msra.mxu0 0.0
      %330 = vmatprep.subr.mxu0 0.0
      %331 = vmatpush1.msra.mxu0 0.0
      %332 = vmatprep.subr.mxu0 0.0
      %333 = vmatpush1.msra.mxu0 0.0
      %334 = vmatprep.subr.mxu0 0.0
      %335 = vmatpush1.msra.mxu0 %v293
      %336 = vmatprep.subr.mxu0 0.0
      %337 = vmatpush2.msra.mxu0 0.0
      %338 = vmatprep.subr.mxu0 0.0
      %339 = vmatpush2.msra.mxu0 0.0
      %340 = vmatprep.subr.mxu0 0.0
      %341 = vmatpush2.msra.mxu0 0.0
      %342 = vmatprep.subr.mxu0 0.0
      %343 = vmatpush2.msra.mxu0 0.0
      %344 = vmatprep.subr.mxu0 0.0
      %345 = vmatpush2.msra.mxu0 0.0
      %346 = vmatprep.subr.mxu0 0.0
      %347 = vmatpush2.msra.mxu0 0.0
      %348 = vmatprep.subr.mxu0 0.0
      %349 = vmatpush2.msra.mxu0 0.0
      %350 = vmatprep.subr.mxu0 0.0
      %351 = vmatpush2.msra.mxu0 0.0
      %352 = vmatprep.subr.mxu0 0.0
      %353 = vmatpush2.msra.mxu0 0.0
      %354 = vmatprep.subr.mxu0 0.0
      %355 = vmatpush2.msra.mxu0 0.0
      %356 = vmatprep.subr.mxu0 0.0
      %357 = vmatpush2.msra.mxu0 0.0
      %358 = vmatprep.subr.mxu0 0.0
      %359 = vmatpush2.msra.mxu0 0.0
      %360 = vmatprep.subr.mxu0 0.0
      %361 = vmatpush2.msra.mxu0 0.0
      %362 = vmatprep.subr.mxu0 0.0
      %363 = vmatpush2.msra.mxu0 0.0
      %364 = vmatprep.subr.mxu0 0.0
      %365 = vmatpush2.msra.mxu0 0.0
      %366 = vmatprep.subr.mxu0 0.0
      %367 = vmatpush2.msra.mxu0 0.0
      %368 = vmatprep.mubr.f32.mxu0 0.0
      %369 = vmatmul.mubr.f32.gmra.mxu0 %v296
      %v370 = vpop.f32.mrf.mxu0
      %v371 = vadd.f32 0.0, %v370
      %v372 = vpop.f32.mrf.mxu0
      %373 = vmatprep.mubr.f32.mxu0 0.0
      %374 = vmatmul.mubr.f32.gmra.mxu0 %v299
      %v375 = vpop.f32.mrf.mxu0
      %v376 = vadd.f32 0.0, %v375
      %v377 = vpop.f32.mrf.mxu0
      %378 = vmatprep.mubr.f32.mxu0 0.0
      %379 = vmatmul.mubr.f32.gmra.mxu0 %v302
      %v380 = vpop.f32.mrf.mxu0
      %v381 = vadd.f32 0.0, %v380
      %v382 = vpop.f32.mrf.mxu0
      %383 = vdwg.mxu0
      %384 = vrot.lane.b32.xlu0 %v371, 1
      %v385 = vpop.permute.xlu0 %384
      %v386 = vsel %vm277, %v385, 0.0
      %387 = vrot.lane.b32.xlu0 %v381, 127
      %v388 = vpop.permute.xlu0 %387
      %v389 = vsel %vm283, %v388, 0.0
      %v390 = vadd.f32 %v386, %v376
      %v391 = vadd.f32 %v390, %v389
      %393 = vset.pattern.permute.xlu0 0
      %394 = vperm.xlu0 %393, %v178
      %v395 = vpop.permute.xlu0 %394
      %v397 = vadd.f32 %v391, %v395
      %v398 = vmax.f32 %v397, 0.0
      %399 = vst [vmem:[%s167] sm:$0xff] %v398
      %400 = vrot.lane.b32.xlu0 %v398, 127
      %v401 = vpop.permute.xlu0 %400
      %v402 = vmax.f32 %v398, %v401
      %v403 = vld [vmem:[%s1 + $0x30] sm:$0xff]
      %v404 = vld [vmem:[%s1 + $0x38] sm:$0xff]
      %v405 = vld [vmem:[%s1 + $0x40] sm:$0xff]
      %v406 = vld [vmem:[%s1 + $0x48] sm:$0xff]
      %v407 = vld [vmem:[%s1 + $0x50] sm:$0xff]
      %v408 = vld [vmem:[%s1 + $0x58] sm:$0xff]
      %v409 = vld [vmem:[%s1 + $0x60] sm:$0xff]
      %v410 = vld [vmem:[%s1 + $0x68] sm:$0xff]
      %v411 = vld [vmem:[%s1 + $0x70] sm:$0xff]
      %v412 = vld [vmem:[%s1 + $0x78] sm:$0xff]
      %v413 = vld [vmem:[%s1 + $0x80] sm:$0xff]
      %v414 = vld [vmem:[%s1 + $0x88] sm:$0xff]
      %v415 = vld [vmem:[%s2 + $0x10] sm:$0xff]
      %v416 = vld [vmem:[%s2 + $0x18] sm:$0xff]
      %v417 = vld [vmem:[%s2 + $0x20] sm:$0xff]
      %v418 = vld [vmem:[%s2 + $0x28] sm:$0xff]
      %v420 = vsel %vm294, %v403, 0
      %v423 = vsel %vm294, %v404, 0
      %v426 = vsel %vm294, %v405, 0
      %v429 = vsel %vm294, %v406, 0
      %v432 = vsel %vm294, %v407, 0
      %v435 = vsel %vm294, %v408, 0
      %437 = vmatprep.subr.mxu0 0.0
      %438 = vmatpush1.msra.mxu0 0.0
      %439 = vmatprep.subr.mxu0 0.0
      %440 = vmatpush1.msra.mxu0 0.0
      %441 = vmatprep.subr.mxu0 0.0
      %442 = vmatpush1.msra.mxu0 0.0
      %443 = vmatprep.subr.mxu0 0.0
      %444 = vmatpush1.msra.mxu0 0.0
      %445 = vmatprep.subr.mxu0 0.0
      %446 = vmatpush1.msra.mxu0 0.0
      %447 = vmatprep.subr.mxu0 0.0
      %448 = vmatpush1.msra.mxu0 0.0
      %449 = vmatprep.subr.mxu0 0.0
      %450 = vmatpush1.msra.mxu0 0.0
      %451 = vmatprep.subr.mxu0 0.0
      %452 = vmatpush1.msra.mxu0 0.0
      %453 = vmatprep.subr.mxu0 0.0
      %454 = vmatpush1.msra.mxu0 0.0
      %455 = vmatprep.subr.mxu0 0.0
      %456 = vmatpush1.msra.mxu0 0.0
      %457 = vmatprep.subr.mxu0 0.0
      %458 = vmatpush1.msra.mxu0 0.0
      %459 = vmatprep.subr.mxu0 0.0
      %460 = vmatpush1.msra.mxu0 0.0
      %461 = vmatprep.subr.mxu0 0.0
      %462 = vmatpush1.msra.mxu0 0.0
      %463 = vmatprep.subr.mxu0 0.0
      %464 = vmatpush1.msra.mxu0 0.0
      %465 = vmatprep.subr.mxu0 0.0
      %466 = vmatpush1.msra.mxu0 0.0
      %467 = vmatprep.subr.mxu0 0.0
      %468 = vmatpush1.msra.mxu0 %v402
      %469 = vmatprep.subr.mxu0 0.0
      %470 = vmatpush2.msra.mxu0 0.0
      %471 = vmatprep.subr.mxu0 0.0
      %472 = vmatpush2.msra.mxu0 0.0
      %473 = vmatprep.subr.mxu0 0.0
      %474 = vmatpush2.msra.mxu0 0.0
      %475 = vmatprep.subr.mxu0 0.0
      %476 = vmatpush2.msra.mxu0 0.0
      %477 = vmatprep.subr.mxu0 0.0
      %478 = vmatpush2.msra.mxu0 0.0
      %479 = vmatprep.subr.mxu0 0.0
      %480 = vmatpush2.msra.mxu0 0.0
      %481 = vmatprep.subr.mxu0 0.0
      %482 = vmatpush2.msra.mxu0 0.0
      %483 = vmatprep.subr.mxu0 0.0
      %484 = vmatpush2.msra.mxu0 0.0
      %485 = vmatprep.subr.mxu0 0.0
      %486 = vmatpush2.msra.mxu0 0.0
      %487 = vmatprep.subr.mxu0 0.0
      %488 = vmatpush2.msra.mxu0 0.0
      %489 = vmatprep.subr.mxu0 0.0
      %490 = vmatpush2.msra.mxu0 0.0
      %491 = vmatprep.subr.mxu0 0.0
      %492 = vmatpush2.msra.mxu0 0.0
      %493 = vmatprep.subr.mxu0 0.0
      %494 = vmatpush2.msra.mxu0 0.0
      %495 = vmatprep.subr.mxu0 0.0
      %496 = vmatpush2.msra.mxu0 0.0
      %497 = vmatprep.subr.mxu0 0.0
      %498 = vmatpush2.msra.mxu0 0.0
      %499 = vmatprep.subr.mxu0 0.0
      %500 = vmatpush2.msra.mxu0 0.0
      %501 = vmatprep.mubr.f32.mxu0 0.0
      %502 = vmatmul.mubr.f32.gmra.mxu0 %v420
      %v503 = vpop.f32.mrf.mxu0
      %v504 = vadd.f32 0.0, %v503
      %v505 = vpop.f32.mrf.mxu0
      %506 = vmatprep.mubr.f32.mxu0 0.0
      %507 = vmatmul.mubr.f32.gmra.mxu0 %v423
      %v508 = vpop.f32.mrf.mxu0
      %v509 = vadd.f32 0.0, %v508
      %v510 = vpop.f32.mrf.mxu0
      %511 = vmatprep.mubr.f32.mxu0 0.0
      %512 = vmatmul.mubr.f32.gmra.mxu0 %v426
      %v513 = vpop.f32.mrf.mxu0
      %v514 = vadd.f32 0.0, %v513
      %v515 = vpop.f32.mrf.mxu0
      %516 = vmatprep.mubr.f32.mxu0 0.0
      %517 = vmatmul.mubr.f32.gmra.mxu0 %v429
      %v518 = vpop.f32.mrf.mxu0
      %v519 = vadd.f32 0.0, %v518
      %v520 = vpop.f32.mrf.mxu0
      %521 = vmatprep.mubr.f32.mxu0 0.0
      %522 = vmatmul.mubr.f32.gmra.mxu0 %v432
      %v523 = vpop.f32.mrf.mxu0
      %v524 = vadd.f32 0.0, %v523
      %v525 = vpop.f32.mrf.mxu0
      %526 = vmatprep.mubr.f32.mxu0 0.0
      %527 = vmatmul.mubr.f32.gmra.mxu0 %v435
      %v528 = vpop.f32.mrf.mxu0
      %v529 = vadd.f32 0.0, %v528
      %v530 = vpop.f32.mrf.mxu0
      %531 = vdwg.mxu0
      %532 = vrot.lane.b32.xlu0 %v504, 2
      %v533 = vpop.permute.xlu0 %532
      %534 = vrot.lane.b32.xlu0 %v509, 2
      %v535 = vpop.permute.xlu0 %534
      %v536 = vsel %vm277, %v533, 0.0
      %v537 = vsel %vm277, %v535, 0.0
      %vm538 = vcmp.ne.s32.totalorder %v169, 14
      %539 = vrot.lane.b32.xlu0 %v524, 126
      %v540 = vpop.permute.xlu0 %539
      %541 = vrot.lane.b32.xlu0 %v529, 126
      %v542 = vpop.permute.xlu0 %541
      %v543 = vsel %vm538, 1, 0
      %vm544 = vcmp.eq.s32.totalorder %v543, 1
      %v545 = vsel %vm544, %v540, 0.0
      %v546 = vsel %vm544, %v542, 0.0
      %v547 = vadd.f32 %v536, %v514
      %v548 = vadd.f32 %v537, %v519
      %v549 = vadd.f32 %v547, %v545
      %v550 = vadd.f32 %v548, %v546
      %552 = vset.pattern.permute.xlu0 0
      %553 = vperm.xlu0 %552, %v415
      %v554 = vpop.permute.xlu0 %553
      %557 = vset.pattern.permute.xlu0 0
      %558 = vperm.xlu0 %557, %v416
      %v559 = vpop.permute.xlu0 %558
      %v561 = vadd.f32 %v549, %v554
      %v562 = vadd.f32 %v550, %v559
      %v563 = vmax.f32 %v561, 0.0
      %v564 = vmax.f32 %v562, 0.0
      %vm565 = vcmask 130048
      %v567 = vsel %vm565, %v409, 0
      %v570 = vsel %vm565, %v410, 0
      %v573 = vsel %vm565, %v411, 0
      %v576 = vsel %vm565, %v412, 0
      %v579 = vsel %vm565, %v413, 0
      %v582 = vsel %vm565, %v414, 0
      %584 = vmatprep.subr.mxu0 0.0
      %585 = vmatpush1.msra.mxu0 0.0
      %586 = vmatprep.subr.mxu0 0.0
      %587 = vmatpush1.msra.mxu0 0.0
      %588 = vmatprep.subr.mxu0 0.0
      %589 = vmatpush1.msra.mxu0 0.0
      %590 = vmatprep.subr.mxu0 0.0
      %591 = vmatpush1.msra.mxu0 0.0
      %592 = vmatprep.subr.mxu0 0.0
      %593 = vmatpush1.msra.mxu0 0.0
      %594 = vmatprep.subr.mxu0 0.0
      %595 = vmatpush1.msra.mxu0 0.0
      %596 = vmatprep.subr.mxu0 0.0
      %597 = vmatpush1.msra.mxu0 0.0
      %598 = vmatprep.subr.mxu0 0.0
      %599 = vmatpush1.msra.mxu0 0.0
      %600 = vmatprep.subr.mxu0 0.0
      %601 = vmatpush1.msra.mxu0 0.0
      %602 = vmatprep.subr.mxu0 0.0
      %603 = vmatpush1.msra.mxu0 0.0
      %604 = vmatprep.subr.mxu0 0.0
      %605 = vmatpush1.msra.mxu0 0.0
      %606 = vmatprep.subr.mxu0 0.0
      %607 = vmatpush1.msra.mxu0 0.0
      %608 = vmatprep.subr.mxu0 0.0
      %609 = vmatpush1.msra.mxu0 0.0
      %610 = vmatprep.subr.mxu0 0.0
      %611 = vmatpush1.msra.mxu0 0.0
      %612 = vmatprep.subr.mxu0 0.0
      %613 = vmatpush1.msra.mxu0 %v564
      %614 = vmatprep.subr.mxu0 0.0
      %615 = vmatpush1.msra.mxu0 %v563
      %616 = vmatprep.subr.mxu0 0.0
      %617 = vmatpush2.msra.mxu0 0.0
      %618 = vmatprep.subr.mxu0 0.0
      %619 = vmatpush2.msra.mxu0 0.0
      %620 = vmatprep.subr.mxu0 0.0
      %621 = vmatpush2.msra.mxu0 0.0
      %622 = vmatprep.subr.mxu0 0.0
      %623 = vmatpush2.msra.mxu0 0.0
      %624 = vmatprep.subr.mxu0 0.0
      %625 = vmatpush2.msra.mxu0 0.0
      %626 = vmatprep.subr.mxu0 0.0
      %627 = vmatpush2.msra.mxu0 0.0
      %628 = vmatprep.subr.mxu0 0.0
      %629 = vmatpush2.msra.mxu0 0.0
      %630 = vmatprep.subr.mxu0 0.0
      %631 = vmatpush2.msra.mxu0 0.0
      %632 = vmatprep.subr.mxu0 0.0
      %633 = vmatpush2.msra.mxu0 0.0
      %634 = vmatprep.subr.mxu0 0.0
      %635 = vmatpush2.msra.mxu0 0.0
      %636 = vmatprep.subr.mxu0 0.0
      %637 = vmatpush2.msra.mxu0 0.0
      %638 = vmatprep.subr.mxu0 0.0
      %639 = vmatpush2.msra.mxu0 0.0
      %640 = vmatprep.subr.mxu0 0.0
      %641 = vmatpush2.msra.mxu0 0.0
      %642 = vmatprep.subr.mxu0 0.0
      %643 = vmatpush2.msra.mxu0 0.0
      %644 = vmatprep.subr.mxu0 0.0
      %645 = vmatpush2.msra.mxu0 0.0
      %646 = vmatprep.subr.mxu0 0.0
      %647 = vmatpush2.msra.mxu0 0.0
      %648 = vmatprep.mubr.f32.mxu0 0.0
      %649 = vmatmul.mubr.f32.gmra.mxu0 %v567
      %v650 = vpop.f32.mrf.mxu0
      %v651 = vadd.f32 0.0, %v650
      %v652 = vpop.f32.mrf.mxu0
      %653 = vmatprep.mubr.f32.mxu0 0.0
      %654 = vmatmul.mubr.f32.gmra.mxu0 %v570
      %v655 = vpop.f32.mrf.mxu0
      %v656 = vadd.f32 0.0, %v655
      %v657 = vpop.f32.mrf.mxu0
      %658 = vmatprep.mubr.f32.mxu0 0.0
      %659 = vmatmul.mubr.f32.gmra.mxu0 %v573
      %v660 = vpop.f32.mrf.mxu0
      %v661 = vadd.f32 0.0, %v660
      %v662 = vpop.f32.mrf.mxu0
      %663 = vmatprep.mubr.f32.mxu0 0.0
      %664 = vmatmul.mubr.f32.gmra.mxu0 %v576
      %v665 = vpop.f32.mrf.mxu0
      %v666 = vadd.f32 0.0, %v665
      %v667 = vpop.f32.mrf.mxu0
      %668 = vmatprep.mubr.f32.mxu0 0.0
      %669 = vmatmul.mubr.f32.gmra.mxu0 %v579
      %v670 = vpop.f32.mrf.mxu0
      %v671 = vadd.f32 0.0, %v670
      %v672 = vpop.f32.mrf.mxu0
      %673 = vmatprep.mubr.f32.mxu0 0.0
      %674 = vmatmul.mubr.f32.gmra.mxu0 %v582
      %v675 = vpop.f32.mrf.mxu0
      %v676 = vadd.f32 0.0, %v675
      %v677 = vpop.f32.mrf.mxu0
      %678 = vdwg.mxu0
      %679 = vrot.lane.b32.xlu0 %v651, 2
      %v680 = vpop.permute.xlu0 %679
      %681 = vrot.lane.b32.xlu0 %v656, 2
      %v682 = vpop.permute.xlu0 %681
      %v683 = vsel %vm277, %v680, 0.0
      %v684 = vsel %vm277, %v682, 0.0
      %685 = vrot.lane.b32.xlu0 %v671, 126
      %v686 = vpop.permute.xlu0 %685
      %687 = vrot.lane.b32.xlu0 %v676, 126
      %v688 = vpop.permute.xlu0 %687
      %v689 = vsel %vm544, %v686, 0.0
      %v690 = vsel %vm544, %v688, 0.0
      %v691 = vadd.f32 %v683, %v661
      %v692 = vadd.f32 %v684, %v666
      %v693 = vadd.f32 %v691, %v689
      %v694 = vadd.f32 %v692, %v690
      %696 = vset.pattern.permute.xlu0 0
      %697 = vperm.xlu0 %696, %v417
      %v698 = vpop.permute.xlu0 %697
      %701 = vset.pattern.permute.xlu0 0
      %702 = vperm.xlu0 %701, %v418
      %v703 = vpop.permute.xlu0 %702
      %v705 = vadd.f32 %v693, %v698
      %v706 = vadd.f32 %v694, %v703
      %v707 = vmax.f32 %v705, 0.0
      %v708 = vmax.f32 %v706, 0.0
      %709 = vst [vmem:[%s167 + $0x10] sm:$0xff] %v707
      %710 = vst [vmem:[%s167 + $0x18] sm:$0xff] %v708
      %711 = vrot.lane.b32.xlu0 %v707, 126
      %v712 = vpop.permute.xlu0 %711
      %713 = vrot.lane.b32.xlu0 %v708, 126
      %v714 = vpop.permute.xlu0 %713
      %v715 = vmax.f32 %v707, %v712
      %v716 = vmax.f32 %v708, %v714
      %717 = vst [vmem:[%s167 + $0x20] sm:$0xff] %v715
      %718 = vst [vmem:[%s167 + $0x28] sm:$0xff] %v716
      %p719 = scmp.lt.s32.totalorder %s14, 1
      %s720 = scalar_select %p719, %s14, 1
      %s721 = smul.addr %s720, 6
      %s722 = smul.addr %s721, 8
      %s723 = scalar_lea.vmem %s3, %s722
      // Predicated region
      $region33: #{encoder_forward.1} parent=31 // pred_check
        %p724 = pneg %p100
      $region34: #{encoder_forward.1} parent=31 // pred_check_branch
        %726 = sbr.rel (%p724) target = $region36
      $region35: #{encoder_forward.1} parent=31 // pred_region
        _
      $region36: #{encoder_forward.1} parent=31 // pred_fallthru
        _
    $region32: #{encoder_forward.1} parent=5 // pred_fallthru
      _
    %p727 = scmp.le.s32.totalorder 2, %s9
    // Predicated region
    $region37: #{encoder_forward.1} parent=5 // pred_check
      %p728 = pneg %p727
    $region38: #{encoder_forward.1} parent=5 // pred_check_branch
      %730 = sbr.rel (%p728) target = $region40
    $region39: #{encoder_forward.1} parent=5 // pred_region
      %s731 = ssub.s32 %s9, 2
      // Predicated region
      $region41: #{encoder_forward.1} parent=39 // pred_check
        %p732 = pneg %p106
      $region42: #{encoder_forward.1} parent=39 // pred_check_branch
        %734 = sbr.rel (%p732) target = $region44
      $region43: #{encoder_forward.1} parent=39 // pred_region
        %p735 = scmp.lt.s32.totalorder %s15, 1
        %s736 = scalar_select %p735, %s15, 1
        %s737 = smul.addr %s736, 6
        %s738 = smul.addr %s737, 8
        %s739 = scalar_lea.vmem %s3, %s738
      $region44: #{encoder_forward.1} parent=39 // pred_fallthru
        _
    $region40: #{encoder_forward.1} parent=5 // pred_fallthru
      _
  $region6: #{encoder_forward.1} parent=0 // loop_footer
    %s13 = sadd.s32 1, %s9
  $region7: #{encoder_forward.1} parent=0 // loop_footer_branch
    %8 = sbr.rel target = $region3
  $region8: #{encoder_forward.1} parent=0 // loop_exit
    _

</llo_original>
